<compile_context>
chip_gen: v6e
topology: v6e:2x2x1
jax: 0.10.0
libtpu: 0.0.40
codegen_flags: <defaults>
</compile_context>

<pallas_src>
import jax
import jax.numpy as jnp
from jax.experimental import pallas as pl
from jax.experimental.pallas import tpu as pltpu


# --------------------------------------------------------------------------- #
# Kernels
# --------------------------------------------------------------------------- #
def _prompt_kernel_shared_suffix(prefix_ref, ctx_ref, ctx_neg_ref, suffix_ref,
                                 prompts_ref, prompts_neg_ref):
    """neg_prompt_wcls=True: both outputs share the class-wise suffix.

    Blocks:
      prefix_ref      : (C_BLK, pre_len, D)
      ctx_ref         : (n_ctx, D)    constant block index -> VMEM-resident
      ctx_neg_ref     : (n_ctx, D)
      suffix_ref      : (C_BLK, suf_len, D)
      prompts_ref     : (C_BLK, seq_len, D)
      prompts_neg_ref : (C_BLK, seq_len, D)
    """
    out_dt = prompts_ref.dtype
    c_blk, pre_len, _ = prefix_ref.shape
    n_ctx, d = ctx_ref.shape

    # In-kernel dtype promotion: rides VPU slack, no extra HBM pass in the wrapper.
    prefix = prefix_ref[...].astype(out_dt)
    suffix = suffix_ref[...].astype(out_dt)
    ctx_b = jnp.broadcast_to(ctx_ref[...].astype(out_dt)[None], (c_blk, n_ctx, d))
    ctx_neg_b = jnp.broadcast_to(ctx_neg_ref[...].astype(out_dt)[None], (c_blk, n_ctx, d))

    # Three static sub-slice stores per output (no concat temp in VMEM); the
    # broadcasts feed the stores directly.
    prompts_ref[:, :pre_len, :] = prefix
    prompts_ref[:, pre_len:pre_len + n_ctx, :] = ctx_b
    prompts_ref[:, pre_len + n_ctx:, :] = suffix

    prompts_neg_ref[:, :pre_len, :] = prefix
    prompts_neg_ref[:, pre_len:pre_len + n_ctx, :] = ctx_neg_b
    prompts_neg_ref[:, pre_len + n_ctx:, :] = suffix


def _prompt_kernel_two_suffixes(prefix_ref, ctx_ref, ctx_neg_ref, suffix_ref,
                                suffix_nocls_ref, prompts_ref, prompts_neg_ref):
    """neg_prompt_wcls=False: negative prompts use the no-class suffix."""
    out_dt = prompts_ref.dtype
    c_blk, pre_len, _ = prefix_ref.shape
    n_ctx, d = ctx_ref.shape

    prefix = prefix_ref[...].astype(out_dt)
    ctx_b = jnp.broadcast_to(ctx_ref[...].astype(out_dt)[None], (c_blk, n_ctx, d))
    ctx_neg_b = jnp.broadcast_to(ctx_neg_ref[...].astype(out_dt)[None], (c_blk, n_ctx, d))

    prompts_ref[:, :pre_len, :] = prefix
    prompts_ref[:, pre_len:pre_len + n_ctx, :] = ctx_b
    prompts_ref[:, pre_len + n_ctx:, :] = suffix_ref[...].astype(out_dt)

    prompts_neg_ref[:, :pre_len, :] = prefix
    prompts_neg_ref[:, pre_len:pre_len + n_ctx, :] = ctx_neg_b
    prompts_neg_ref[:, pre_len + n_ctx:, :] = suffix_nocls_ref[...].astype(out_dt)


# --------------------------------------------------------------------------- #
# VMEM budgeting / tiling helpers
# --------------------------------------------------------------------------- #
def _vmem_capacity_bytes():
    """Physical VMEM per core; conservative fallback if query fails."""
    try:
        cap = int(pltpu.get_tpu_info().vmem_capacity_bytes)
        if cap > 0:
            return cap
    except Exception:
        pass
    return 64 << 20  # v7x per-TC VMEM (smallest current generation)


def _pick_class_block(n_cls, pre_len, n_ctx, suf_len, ctx_dim, itemsize,
                      n_suffix_inputs):
    """Largest class block that fits the double-buffered per-step working set in
    ~50% of VMEM, while keeping >= 2 (and even when >1) grid steps so the
    'parallel' class axis splits evenly across both TensorCores on v7x."""
    if n_cls <= 1:
        return 1
    seq_len = pre_len + n_ctx + suf_len
    budget = min(_vmem_capacity_bytes() // 2, 48 << 20)
    # Per-class bytes per step: prefix + suffix input(s) + 2 outputs, x2 buffers.
    per_class = 2 * itemsize * ctx_dim * (pre_len + n_suffix_inputs * suf_len + 2 * seq_len)
    resident = 4 * itemsize * n_ctx * ctx_dim  # ctx + ctx_neg, x2 buffers
    max_blk = max(1, (budget - resident) // per_class)
    c_blk = int(min(max_blk, pl.cdiv(n_cls, 2)))  # keep >= 2 steps
    steps = int(pl.cdiv(n_cls, c_blk))
    if steps > 1 and steps % 2 == 1:
        steps += 1  # even step count -> balanced 2-TC split on v7x
    return int(pl.cdiv(n_cls, steps))


# --------------------------------------------------------------------------- #
# Wrapper
# --------------------------------------------------------------------------- #
def prompt_learner_forward(ctx, ctx_neg, token_prefix, token_suffix,
                           token_suffix_nocls, temperature, spatial_T,
                           neg_prompt_wcls=True, class_block=None):
    """JAX/Pallas equivalent of PromptLearner.forward
    (class_token_position='end', generic 2-D ctx)."""
    assert ctx.ndim == 2 and ctx_neg.ndim == 2, "only generic 2-D ctx supported"
    n_cls, pre_len, ctx_dim = token_prefix.shape
    n_ctx = ctx.shape[0]
    suf_len = token_suffix.shape[1]
    seq_len = pre_len + n_ctx + suf_len
    if not neg_prompt_wcls:
        assert token_suffix_nocls.shape == token_suffix.shape, (
            "token_suffix_nocls must match token_suffix shape "
            f"({token_suffix_nocls.shape} vs {token_suffix.shape})")

    # Output dtype follows torch.cat-style promotion over the tensors actually used.
    used = [ctx, ctx_neg, token_prefix, token_suffix]
    if not neg_prompt_wcls:
        used.append(token_suffix_nocls)
    out_dtype = jnp.result_type(*[a.dtype for a in used])
    # NOTE: casts happen inside the kernel (no wrapper-level astype HBM pass).

    itemsize = max(jnp.dtype(out_dtype).itemsize,
                   max(jnp.dtype(a.dtype).itemsize for a in used))
    n_suf = 1 if neg_prompt_wcls else 2

    if class_block is None:
        c_blk = _pick_class_block(n_cls, pre_len, n_ctx, suf_len, ctx_dim,
                                  itemsize, n_suf)
    else:
        c_blk = int(class_block)
    c_blk = max(1, min(c_blk, n_cls))
    grid = (int(pl.cdiv(n_cls, c_blk)),)   # padded last block handled by Pallas

    # Scoped-VMEM limit matching the double-buffered working set (+ headroom).
    per_step = itemsize * c_blk * ctx_dim * (pre_len + n_suf * suf_len + 2 * seq_len)
    resident = 2 * itemsize * n_ctx * ctx_dim
    footprint = 2 * (per_step + resident)
    cap = _vmem_capacity_bytes()
    vmem_limit = int(min(max(footprint + (8 << 20), 16 << 20),
                         max(cap - (4 << 20), 16 << 20)))

    out_shape = (
        jax.ShapeDtypeStruct((n_cls, seq_len, ctx_dim), out_dtype),
        jax.ShapeDtypeStruct((n_cls, seq_len, ctx_dim), out_dtype),
    )

    # Advisory cost estimate: pure data movement, no FLOPs.
    bytes_read = itemsize * (n_cls * pre_len * ctx_dim
                             + 2 * n_ctx * ctx_dim
                             + n_suf * n_cls * suf_len * ctx_dim)
    bytes_written = jnp.dtype(out_dtype).itemsize * 2 * n_cls * seq_len * ctx_dim
    cost = pl.CostEstimate(flops=0, transcendentals=0,
                           bytes_accessed=bytes_read + bytes_written)

    pre_spec = pl.BlockSpec((c_blk, pre_len, ctx_dim), lambda i: (i, 0, 0))
    ctx_spec = pl.BlockSpec((n_ctx, ctx_dim), lambda i: (0, 0))  # VMEM-resident
    suf_spec = pl.BlockSpec((c_blk, suf_len, ctx_dim), lambda i: (i, 0, 0))
    out_spec = pl.BlockSpec((c_blk, seq_len, ctx_dim), lambda i: (i, 0, 0))

    if neg_prompt_wcls:
        kernel = _prompt_kernel_shared_suffix
        in_specs = [pre_spec, ctx_spec, ctx_spec, suf_spec]
        args = (token_prefix, ctx, ctx_neg, token_suffix)
    else:
        kernel = _prompt_kernel_two_suffixes
        in_specs = [pre_spec, ctx_spec, ctx_spec, suf_spec, suf_spec]
        args = (token_prefix, ctx, ctx_neg, token_suffix, token_suffix_nocls)

    grid_spec = pltpu.PrefetchScalarGridSpec(
        num_scalar_prefetch=0,
        grid=grid,
        in_specs=in_specs,
        out_specs=[out_spec, out_spec],
    )

    prompts, prompts_neg = pl.pallas_call(
        kernel,
        out_shape=out_shape,
        grid_spec=grid_spec,
        cost_estimate=cost,
        compiler_params=pltpu.CompilerParams(
            # If profiling on v7x shows only one TC active, switch to
            # pltpu.CORE_PARALLEL for this axis.
            dimension_semantics=("parallel",),
            vmem_limit_bytes=vmem_limit),
    )(*args)

    return prompts, prompts_neg, temperature, spatial_T


# --------------------------------------------------------------------------- #
# Pure-JAX reference
# --------------------------------------------------------------------------- #
def _reference_forward(ctx, ctx_neg, token_prefix, token_suffix,
                       token_suffix_nocls, temperature, spatial_T,
                       neg_prompt_wcls=True):
    n_cls = token_prefix.shape[0]
    ctx_b = jnp.broadcast_to(ctx[None], (n_cls,) + ctx.shape)
    ctx_neg_b = jnp.broadcast_to(ctx_neg[None], (n_cls,) + ctx_neg.shape)
    prompts = jnp.concatenate([token_prefix, ctx_b, token_suffix], axis=1)
    suf = token_suffix if neg_prompt_wcls else token_suffix_nocls
    prompts_neg = jnp.concatenate([token_prefix, ctx_neg_b, suf], axis=1)
    return prompts, prompts_neg, temperature, spatial_T


if __name__ == "__main__":
    # Small, module-consistent shapes (stand-in for CLIP's n_cls~80, seq=77, D=512).
    n_ctx = 4        # context tokens
    ctx_dim = 128    # CLIP ln_final width (lane-aligned)
    seq_len = 16     # total prompt length
    suf_len = seq_len - 1 - n_ctx
    base_dtype = jnp.float32

    key = jax.random.PRNGKey(0)
    k_ctx, k_ctxn, k_pre, k_suf, k_sufn = jax.random.split(key, 5)

    temperature = jnp.asarray(3.91, dtype=base_dtype)
    spatial_T = jnp.asarray(3.0, dtype=base_dtype)

    def make_inputs(n_cls, ctx_dtype):
        # Parameters: nn.init.normal_(std=0.02); buffers: frozen CLIP embeddings.
        ctx = (0.02 * jax.random.normal(k_ctx, (n_ctx, ctx_dim))).astype(ctx_dtype)
        ctx_neg = (0.02 * jax.random.normal(k_ctxn, (n_ctx, ctx_dim))).astype(ctx_dtype)
        token_prefix = jax.random.normal(k_pre, (n_cls, 1, ctx_dim), dtype=base_dtype)
        token_suffix = jax.random.normal(k_suf, (n_cls, suf_len, ctx_dim), dtype=base_dtype)
        token_suffix_nocls = jax.random.normal(k_sufn, (n_cls, suf_len, ctx_dim),
                                               dtype=base_dtype)
        return ctx, ctx_neg, token_prefix, token_suffix, token_suffix_nocls

    def check(n_cls, neg_prompt_wcls, ctx_dtype=base_dtype):
        args = make_inputs(n_cls, ctx_dtype)
        out = prompt_learner_forward(*args, temperature, spatial_T,
                                     neg_prompt_wcls=neg_prompt_wcls)
        jax.block_until_ready(out)
        ref = _reference_forward(*args, temperature, spatial_T,
                                 neg_prompt_wcls=neg_prompt_wcls)
        p, pn, t, s = out
        rp, rpn, rt, rs = ref
        assert p.shape == (n_cls, seq_len, ctx_dim) and pn.shape == rp.shape
        assert p.dtype == rp.dtype and pn.dtype == rpn.dtype
        assert jnp.array_equal(p, rp), f"prompts mismatch (n_cls={n_cls}, wcls={neg_prompt_wcls})"
        assert jnp.array_equal(pn, rpn), f"prompts_neg mismatch (n_cls={n_cls}, wcls={neg_prompt_wcls})"
        assert jnp.allclose(t, rt) and jnp.allclose(s, rs)

    check(8, True)                 # shared-suffix path (suffix deduped)
    check(8, False)                # two-suffix path
    check(7, True)                 # non-divisor n_cls -> padded last grid block
    check(8, True, jnp.bfloat16)   # mixed dtype -> in-kernel promotion to f32

    print("KERNEL_OK")
</pallas_src>

<mosaic_0001>
module attributes {stable_mosaic.version = 11 : i64} {
  func.func @_prompt_kernel_shared_suffix(%arg0: i32, %arg1: memref<4x1x128xf32, #tpu.memory_space<vmem>>, %arg2: memref<4x128xf32, #tpu.memory_space<vmem>>, %arg3: memref<4x128xf32, #tpu.memory_space<vmem>>, %arg4: memref<4x11x128xf32, #tpu.memory_space<vmem>>, %arg5: memref<4x16x128xf32, #tpu.memory_space<vmem>>, %arg6: memref<4x16x128xf32, #tpu.memory_space<vmem>>) attributes {dimension_semantics = [#tpu.dimension_semantics<parallel>], iteration_bounds = array<i64: 2>, scalar_prefetch = 0 : i64, scratch_operands = 0 : i64, tpu.core_type = #tpu.core_type<tc>, window_params = [{transform_indices = @transform_0, window_bounds = array<i64: 4, 1, 128>}, {pipeline_mode = #tpu.pipeline_mode<synchronous>, transform_indices = @transform_1, window_bounds = array<i64: 4, 128>}, {pipeline_mode = #tpu.pipeline_mode<synchronous>, transform_indices = @transform_2, window_bounds = array<i64: 4, 128>}, {transform_indices = @transform_3, window_bounds = array<i64: 4, 11, 128>}, {transform_indices = @transform_4, window_bounds = array<i64: 4, 16, 128>}, {transform_indices = @transform_5, window_bounds = array<i64: 4, 16, 128>}]} {
    %c0 = arith.constant 0 : index
    %c0_0 = arith.constant 0 : index
    %c0_1 = arith.constant 0 : index
    %0 = vector.load %arg1[%c0, %c0_0, %c0_1] : memref<4x1x128xf32, #tpu.memory_space<vmem>>, vector<4x1x128xf32>
    %c0_2 = arith.constant 0 : index
    %c0_3 = arith.constant 0 : index
    %c0_4 = arith.constant 0 : index
    %1 = vector.load %arg4[%c0_2, %c0_3, %c0_4] : memref<4x11x128xf32, #tpu.memory_space<vmem>>, vector<4x11x128xf32>
    %c0_5 = arith.constant 0 : index
    %c0_6 = arith.constant 0 : index
    %2 = vector.load %arg2[%c0_5, %c0_6] : memref<4x128xf32, #tpu.memory_space<vmem>>, vector<4x128xf32>
    %3 = vector.shape_cast %2 : vector<4x128xf32> to vector<1x4x128xf32>
    %4 = vector.shape_cast %3 : vector<1x4x128xf32> to vector<1x4x128xf32>
    %5 = vector.broadcast %4 : vector<1x4x128xf32> to vector<4x4x128xf32>
    %c0_7 = arith.constant 0 : index
    %c0_8 = arith.constant 0 : index
    %6 = vector.load %arg3[%c0_7, %c0_8] : memref<4x128xf32, #tpu.memory_space<vmem>>, vector<4x128xf32>
    %7 = vector.shape_cast %6 : vector<4x128xf32> to vector<1x4x128xf32>
    %8 = vector.shape_cast %7 : vector<1x4x128xf32> to vector<1x4x128xf32>
    %9 = vector.broadcast %8 : vector<1x4x128xf32> to vector<4x4x128xf32>
    %c0_9 = arith.constant 0 : index
    %c0_10 = arith.constant 0 : index
    %c0_11 = arith.constant 0 : index
    %10 = vector.load %arg5[%c0_9, %c0_10, %c0_11] : memref<4x16x128xf32, #tpu.memory_space<vmem>>, vector<4x1x128xf32>
    tpu.vector_store %arg5[%c0_9, %c0_10, %c0_11], %0 {strides = array<i32>} : memref<4x16x128xf32, #tpu.memory_space<vmem>>, vector<4x1x128xf32>,
    %c0_12 = arith.constant 0 : index
    %c1 = arith.constant 1 : index
    %c0_13 = arith.constant 0 : index
    %11 = vector.load %arg5[%c0_12, %c1, %c0_13] : memref<4x16x128xf32, #tpu.memory_space<vmem>>, vector<4x4x128xf32>
    tpu.vector_store %arg5[%c0_12, %c1, %c0_13], %5 {strides = array<i32>} : memref<4x16x128xf32, #tpu.memory_space<vmem>>, vector<4x4x128xf32>,
    %c0_14 = arith.constant 0 : index
    %c5 = arith.constant 5 : index
    %c0_15 = arith.constant 0 : index
    %12 = vector.load %arg5[%c0_14, %c5, %c0_15] : memref<4x16x128xf32, #tpu.memory_space<vmem>>, vector<4x11x128xf32>
    tpu.vector_store %arg5[%c0_14, %c5, %c0_15], %1 {strides = array<i32>} : memref<4x16x128xf32, #tpu.memory_space<vmem>>, vector<4x11x128xf32>,
    %c0_16 = arith.constant 0 : index
    %c0_17 = arith.constant 0 : index
    %c0_18 = arith.constant 0 : index
    %13 = vector.load %arg6[%c0_16, %c0_17, %c0_18] : memref<4x16x128xf32, #tpu.memory_space<vmem>>, vector<4x1x128xf32>
    tpu.vector_store %arg6[%c0_16, %c0_17, %c0_18], %0 {strides = array<i32>} : memref<4x16x128xf32, #tpu.memory_space<vmem>>, vector<4x1x128xf32>,
    %c0_19 = arith.constant 0 : index
    %c1_20 = arith.constant 1 : index
    %c0_21 = arith.constant 0 : index
    %14 = vector.load %arg6[%c0_19, %c1_20, %c0_21] : memref<4x16x128xf32, #tpu.memory_space<vmem>>, vector<4x4x128xf32>
    tpu.vector_store %arg6[%c0_19, %c1_20, %c0_21], %9 {strides = array<i32>} : memref<4x16x128xf32, #tpu.memory_space<vmem>>, vector<4x4x128xf32>,
    %c0_22 = arith.constant 0 : index
    %c5_23 = arith.constant 5 : index
    %c0_24 = arith.constant 0 : index
    %15 = vector.load %arg6[%c0_22, %c5_23, %c0_24] : memref<4x16x128xf32, #tpu.memory_space<vmem>>, vector<4x11x128xf32>
    tpu.vector_store %arg6[%c0_22, %c5_23, %c0_24], %1 {strides = array<i32>} : memref<4x16x128xf32, #tpu.memory_space<vmem>>, vector<4x11x128xf32>,
    return
  }
  func.func @transform_0(%arg0: i32) -> (i32, i32, i32) {
    %c0_i32 = arith.constant 0 : i32
    %c0_i32_0 = arith.constant 0 : i32
    %c0_i32_1 = arith.constant 0 : i32
    return %arg0, %c0_i32, %c0_i32_0 : i32, i32, i32
  }
  func.func @transform_1(%arg0: i32) -> (i32, i32) {
    %c0_i32 = arith.constant 0 : i32
    %c0_i32_0 = arith.constant 0 : i32
    %c0_i32_1 = arith.constant 0 : i32
    return %c0_i32, %c0_i32_0 : i32, i32
  }
  func.func @transform_2(%arg0: i32) -> (i32, i32) {
    %c0_i32 = arith.constant 0 : i32
    %c0_i32_0 = arith.constant 0 : i32
    %c0_i32_1 = arith.constant 0 : i32
    return %c0_i32, %c0_i32_0 : i32, i32
  }
  func.func @transform_3(%arg0: i32) -> (i32, i32, i32) {
    %c0_i32 = arith.constant 0 : i32
    %c0_i32_0 = arith.constant 0 : i32
    %c0_i32_1 = arith.constant 0 : i32
    return %arg0, %c0_i32, %c0_i32_0 : i32, i32, i32
  }
  func.func @transform_4(%arg0: i32) -> (i32, i32, i32) {
    %c0_i32 = arith.constant 0 : i32
    %c0_i32_0 = arith.constant 0 : i32
    %c0_i32_1 = arith.constant 0 : i32
    return %arg0, %c0_i32, %c0_i32_0 : i32, i32, i32
  }
  func.func @transform_5(%arg0: i32) -> (i32, i32, i32) {
    %c0_i32 = arith.constant 0 : i32
    %c0_i32_0 = arith.constant 0 : i32
    %c0_i32_1 = arith.constant 0 : i32
    return %arg0, %c0_i32, %c0_i32_0 : i32, i32, i32
  }
}

</mosaic_0001>

<llo_original>
// kernel: tpu_custom_call.1
$region0: #{tpu_custom_call.1}
  #allocation0 [shape = 'u32[]', space=smem, size = 0x4, offset = 0x4, fixed_abs, tag = 'smem constant byte address 0x4 - core index']
  #allocation1 [shape = 'u32[144,128]{1,0:T(1,128)}', space=vmem, size = 0x12000, scoped, tag = 'internal scratch']
  %s0 = inlined_call_operand.vmem [shape: f32[8,1,128], index: 0, kind: input, shape index: {}]
  %s1 = inlined_call_operand.vmem [shape: f32[4,128], index: 1, kind: input, shape index: {}]
  %s2 = inlined_call_operand.vmem [shape: f32[4,128], index: 2, kind: input, shape index: {}]
  %s3 = inlined_call_operand.vmem [shape: f32[8,11,128], index: 3, kind: input, shape index: {}]
  %s4 = inlined_call_operand.hbm [shape: f32[8,16,128], index: 4, kind: output, shape index: {0}]
  %s5 = inlined_call_operand.hbm [shape: f32[8,16,128], index: 5, kind: output, shape index: {1}]
  %6 = xla_tuple %s4, %s5
  %s7 = sld [smem:[#allocation0]]
  $region57: #{tpu_custom_call.1} parent=0
    _
  %s9 = ssub.s32 1, %s7
  %s10 = scalar_select 0, %s9, %s7
  $region1: #{tpu_custom_call.1} parent=0
    #allocation2 [shape = 'u8[65536]{0}', space=vmem, size = 0x10000, scoped, tag = 'output window, operand 0']
    #allocation3 [shape = 's32[2]{0}', space=sflag, size = 0x8, scoped, tag = 'scoped memory for tpu_custom_call.1']
    #allocation4 [shape = 'u8[65536]{0}', space=vmem, size = 0x10000, scoped, tag = 'output window, operand 1']
    #allocation5 [shape = 's32[2]{0}', space=sflag, size = 0x8, scoped, tag = 'scoped memory for tpu_custom_call.1']
    %11 = vsyncpa [#allocation3], 0
    %s12 = scalar_lea.sflag [#allocation3], 1
    %13 = vsyncpa %s12, 0
    %14 = vsyncpa [#allocation5], 0
    %s15 = scalar_lea.sflag [#allocation5], 1
    %16 = vsyncpa %s15, 0
    loop: start=0, step=1, limit=4
    $region2: #{tpu_custom_call.1} parent=1 // loop_pre_header
      _
    $region3: #{tpu_custom_call.1} parent=1 // loop_header
      %s18 = sphi 0, %s22
      %p19 = scmp.ge.s32.totalorder %s18, 4
      %s28 = sphi 0, %s30
      %s31 = sphi 0, %s28
      %s32 = sphi 0, %s31
      %s48 = sphi 0, %s32
      %s52 = sphi 0, %s52
      %s54 = sphi 0, %s52
      %s55 = sphi 0, %s54
      %s69 = sphi 0, %s55
      %s73 = sphi 0, %s73
      %s75 = sphi 0, %s73
      %s76 = sphi 0, %s75
      %s90 = sphi 0, %s76
      %s96 = sphi 0, %s98
      %s99 = sphi 0, %s96
      %s100 = sphi 0, %s99
      %s116 = sphi 0, %s100
      %s122 = sphi 0, %s124
      %s125 = sphi 0, %s122
      %s126 = sphi 0, %s125
      %s142 = sphi 0, %s126
      %s148 = sphi 0, %s150
      %s151 = sphi 0, %s148
      %s152 = sphi 0, %s151
      %s168 = sphi 0, %s152
    $region4: #{tpu_custom_call.1} parent=1 // loop_header_branch
      %21 = sbr.rel (%p19) target = $region8
    $region5: #{tpu_custom_call.1} parent=1 // loop_body
      %s23 = ssub.s32 %s18, 1
      %s24 = ssub.s32 %s18, 2
      %s25 = sadd.s32 %s18, 1
      %s26 = ssub.s32 %s18, %s25
      %p27 = scmp.eq.s32.totalorder %s26, 0
      %s29 = sadd.s32 %s28, 1
      %s30 = scalar_select %p27, %s28, %s29
      %p33 = pneg %p27
      %p34 = scmp.eq.s32.totalorder %s18, 1
      %p35 = por %p33, %p34
      %p36 = scmp.ne.s32.totalorder %s28, %s31
      %p37 = scmp.eq.s32.totalorder %s18, 0
      %p38 = por %p36, %p37
      %p39 = scmp.ne.s32.totalorder %s28, %s31
      %p40 = scmp.eq.s32.totalorder %s23, 1
      %p41 = por %p39, %p40
      %p42 = scmp.ne.s32.totalorder %s31, %s32
      %p43 = scmp.eq.s32.totalorder %s23, 0
      %p44 = por %p42, %p43
      %p45 = scmp.ne.s32.totalorder %s31, %s32
      %p46 = scmp.eq.s32.totalorder %s24, 1
      %p47 = por %p45, %p46
      %p49 = scmp.ne.s32.totalorder %s32, %s48
      %p50 = scmp.eq.s32.totalorder %s24, 0
      %p51 = por %p49, %p50
      %s53 = sadd.s32 %s52, 1
      %p56 = scmp.eq.s32.totalorder %s18, 1
      %p57 = scmp.ne.s32.totalorder %s52, %s54
      %p58 = scmp.eq.s32.totalorder %s18, 0
      %p59 = por %p57, %p58
      %p60 = scmp.ne.s32.totalorder %s52, %s54
      %p61 = scmp.eq.s32.totalorder %s23, 1
      %p62 = por %p60, %p61
      %p63 = scmp.ne.s32.totalorder %s54, %s55
      %p64 = scmp.eq.s32.totalorder %s23, 0
      %p65 = por %p63, %p64
      %p66 = scmp.ne.s32.totalorder %s54, %s55
      %p67 = scmp.eq.s32.totalorder %s24, 1
      %p68 = por %p66, %p67
      %p70 = scmp.ne.s32.totalorder %s55, %s69
      %p71 = scmp.eq.s32.totalorder %s24, 0
      %p72 = por %p70, %p71
      %s74 = sadd.s32 %s73, 1
      %p77 = scmp.eq.s32.totalorder %s18, 1
      %p78 = scmp.ne.s32.totalorder %s73, %s75
      %p79 = scmp.eq.s32.totalorder %s18, 0
      %p80 = por %p78, %p79
      %p81 = scmp.ne.s32.totalorder %s73, %s75
      %p82 = scmp.eq.s32.totalorder %s23, 1
      %p83 = por %p81, %p82
      %p84 = scmp.ne.s32.totalorder %s75, %s76
      %p85 = scmp.eq.s32.totalorder %s23, 0
      %p86 = por %p84, %p85
      %p87 = scmp.ne.s32.totalorder %s75, %s76
      %p88 = scmp.eq.s32.totalorder %s24, 1
      %p89 = por %p87, %p88
      %p91 = scmp.ne.s32.totalorder %s76, %s90
      %p92 = scmp.eq.s32.totalorder %s24, 0
      %p93 = por %p91, %p92
      %s94 = ssub.s32 %s18, %s25
      %p95 = scmp.eq.s32.totalorder %s94, 0
      %s97 = sadd.s32 %s96, 1
      %s98 = scalar_select %p95, %s96, %s97
      %p101 = pneg %p95
      %p102 = scmp.eq.s32.totalorder %s18, 1
      %p103 = por %p101, %p102
      %p104 = scmp.ne.s32.totalorder %s96, %s99
      %p105 = scmp.eq.s32.totalorder %s18, 0
      %p106 = por %p104, %p105
      %p107 = scmp.ne.s32.totalorder %s96, %s99
      %p108 = scmp.eq.s32.totalorder %s23, 1
      %p109 = por %p107, %p108
      %p110 = scmp.ne.s32.totalorder %s99, %s100
      %p111 = scmp.eq.s32.totalorder %s23, 0
      %p112 = por %p110, %p111
      %p113 = scmp.ne.s32.totalorder %s99, %s100
      %p114 = scmp.eq.s32.totalorder %s24, 1
      %p115 = por %p113, %p114
      %p117 = scmp.ne.s32.totalorder %s100, %s116
      %p118 = scmp.eq.s32.totalorder %s24, 0
      %p119 = por %p117, %p118
      %s120 = ssub.s32 %s18, %s25
      %p121 = scmp.eq.s32.totalorder %s120, 0
      %s123 = sadd.s32 %s122, 1
      %s124 = scalar_select %p121, %s122, %s123
      %p127 = pneg %p121
      %p128 = scmp.eq.s32.totalorder %s18, 1
      %p129 = por %p127, %p128
      %p130 = scmp.ne.s32.totalorder %s122, %s125
      %p131 = scmp.eq.s32.totalorder %s18, 0
      %p132 = por %p130, %p131
      %p133 = scmp.ne.s32.totalorder %s122, %s125
      %p134 = scmp.eq.s32.totalorder %s23, 1
      %p135 = por %p133, %p134
      %p136 = scmp.ne.s32.totalorder %s125, %s126
      %p137 = scmp.eq.s32.totalorder %s23, 0
      %p138 = por %p136, %p137
      %p139 = scmp.ne.s32.totalorder %s125, %s126
      %p140 = scmp.eq.s32.totalorder %s24, 1
      %p141 = por %p139, %p140
      %p143 = scmp.ne.s32.totalorder %s126, %s142
      %p144 = scmp.eq.s32.totalorder %s24, 0
      %p145 = por %p143, %p144
      %s146 = ssub.s32 %s18, %s25
      %p147 = scmp.eq.s32.totalorder %s146, 0
      %s149 = sadd.s32 %s148, 1
      %s150 = scalar_select %p147, %s148, %s149
      %p153 = pneg %p147
      %p154 = scmp.eq.s32.totalorder %s18, 1
      %p155 = por %p153, %p154
      %p156 = scmp.ne.s32.totalorder %s148, %s151
      %p157 = scmp.eq.s32.totalorder %s18, 0
      %p158 = por %p156, %p157
      %p159 = scmp.ne.s32.totalorder %s148, %s151
      %p160 = scmp.eq.s32.totalorder %s23, 1
      %p161 = por %p159, %p160
      %p162 = scmp.ne.s32.totalorder %s151, %s152
      %p163 = scmp.eq.s32.totalorder %s23, 0
      %p164 = por %p162, %p163
      %p165 = scmp.ne.s32.totalorder %s151, %s152
      %p166 = scmp.eq.s32.totalorder %s24, 1
      %p167 = por %p165, %p166
      %p169 = scmp.ne.s32.totalorder %s152, %s168
      %p170 = scmp.eq.s32.totalorder %s24, 0
      %p171 = por %p169, %p170
      %p172 = scmp.le.s32.totalorder 1, %s18
      %p173 = scmp.lt.s32.totalorder %s18, 3
      %p174 = pnand %p172, %p173
      %p175 = pneg %p174
      // Predicated region
      $region9: #{tpu_custom_call.1} parent=5 // pred_check
        _
      $region10: #{tpu_custom_call.1} parent=5 // pred_check_branch
        %177 = sbr.rel (%p174) target = $region12
      $region11: #{tpu_custom_call.1} parent=5 // pred_region
        %s178 = ssub.s32 %s18, 1
        // Predicated region
        $region13: #{tpu_custom_call.1} parent=11 // pred_check
          %p179 = pneg %p65
        $region14: #{tpu_custom_call.1} parent=11 // pred_check_branch
          %181 = sbr.rel (%p179) target = $region16
        $region15: #{tpu_custom_call.1} parent=11 // pred_region
          _
        $region16: #{tpu_custom_call.1} parent=11 // pred_fallthru
          _
        // Predicated region
        $region17: #{tpu_custom_call.1} parent=11 // pred_check
          %p182 = pneg %p86
        $region18: #{tpu_custom_call.1} parent=11 // pred_check_branch
          %184 = sbr.rel (%p182) target = $region20
        $region19: #{tpu_custom_call.1} parent=11 // pred_region
          _
        $region20: #{tpu_custom_call.1} parent=11 // pred_fallthru
          _
      $region12: #{tpu_custom_call.1} parent=5 // pred_fallthru
        _
      %p185 = scmp.lt.s32.totalorder %s18, 2
      // Predicated region
      $region21: #{tpu_custom_call.1} parent=5 // pred_check
        %p186 = pneg %p185
      $region22: #{tpu_custom_call.1} parent=5 // pred_check_branch
        %188 = sbr.rel (%p186) target = $region24
      $region23: #{tpu_custom_call.1} parent=5 // pred_region
        // Predicated region
        $region25: #{tpu_custom_call.1} parent=23 // pred_check
          %p189 = pneg %p38
        $region26: #{tpu_custom_call.1} parent=23 // pred_check_branch
          %191 = sbr.rel (%p189) target = $region28
        $region27: #{tpu_custom_call.1} parent=23 // pred_region
          %s192 = smul.u32 4, %s18
          %p193 = scmp.lt.s32.totalorder %s192, 7
          %s194 = scalar_select %p193, %s192, 7
          %s195 = scalar_lea.vmem %s0, %s194
          %s196 = smul.u32 4, %s18
        $region28: #{tpu_custom_call.1} parent=23 // pred_fallthru
          _
        // Predicated region
        $region29: #{tpu_custom_call.1} parent=23 // pred_check
          %p197 = pneg %p106
        $region30: #{tpu_custom_call.1} parent=23 // pred_check_branch
          %199 = sbr.rel (%p197) target = $region32
        $region31: #{tpu_custom_call.1} parent=23 // pred_region
          %s200 = smul.u32 4, %s18
          %p201 = scmp.lt.s32.totalorder %s200, 7
          %s202 = scalar_select %p201, %s200, 7
          %s203 = smul.addr %s202, 2
          %s204 = smul.addr %s203, 8
          %s205 = scalar_lea.vmem %s3, %s204
          %s206 = smul.u32 4, %s18
        $region32: #{tpu_custom_call.1} parent=23 // pred_fallthru
          _
      $region24: #{tpu_custom_call.1} parent=5 // pred_fallthru
        _
      %p207 = scmp.le.s32.totalorder 1, %s18
      %p208 = scmp.lt.s32.totalorder %s18, 3
      %p209 = pnand %p207, %p208
      %p210 = pneg %p209
      // Predicated region
      $region33: #{tpu_custom_call.1} parent=5 // pred_check
        _
      $region34: #{tpu_custom_call.1} parent=5 // pred_check_branch
        %212 = sbr.rel (%p209) target = $region36
      $region35: #{tpu_custom_call.1} parent=5 // pred_region
        %s213 = ssub.s32 %s18, 1
        %s214 = smul.u32 4, %s23
        %p215 = scmp.lt.s32.totalorder %s214, 7
        %s216 = scalar_select %p215, %s214, 7
        %s217 = scalar_lea.vmem %s0, %s216
        %p218 = pneg %p44
        %p219 = pneg %p41
        %p220 = pneg %p65
        %p221 = pneg %p62
        %p222 = pneg %p86
        %p223 = pneg %p83
        %s224 = smul.u32 4, %s23
        %p225 = scmp.lt.s32.totalorder %s224, 7
        %s226 = scalar_select %p225, %s224, 7
        %s227 = smul.addr %s226, 2
        %s228 = smul.addr %s227, 8
        %s229 = scalar_lea.vmem %s3, %s228
        %p230 = pneg %p112
        %p231 = pneg %p109
        %p232 = pneg %p138
        %p233 = pneg %p135
        %s234 = sand.u32 %s125, 1
        %s235 = scalar_lea.sflag [#allocation3], %s234
        %s236 = sand.u32 %s125, 1
        %s237 = smul.addr %s236, 64
        %s238 = scalar_lea.vmem [#allocation2], %s237
        %p239 = pneg %p164
        %p240 = pneg %p161
        %s241 = sand.u32 %s151, 1
        %s242 = scalar_lea.sflag [#allocation5], %s241
        %s243 = sand.u32 %s151, 1
        %s244 = smul.addr %s243, 64
        %s245 = scalar_lea.vmem [#allocation4], %s244
        %s246 = smul.u32 4, %s23
        %p247 = scmp.lt.s32.totalorder %s246, 7
        %s248 = scalar_select %p247, %s246, 7
        %s249 = scalar_lea.vmem %s0, %s248
        %s250 = smul.u32 4, %s23
        %s251 = smul.u32 4, %s23
        %p252 = scmp.lt.s32.totalorder %s251, 7
        %s253 = scalar_select %p252, %s251, 7
        %s254 = smul.addr %s253, 2
        %s255 = smul.addr %s254, 8
        %s256 = scalar_lea.vmem %s3, %s255
        %s257 = smul.u32 4, %s23
        %s258 = smul.u32 4, %s23
        %s259 = smul.u32 4, %s23
        %v260 = vld [vmem:[%s249] sm:$0x1]
        %v261 = vld [vmem:[%s249 + $0x1] sm:$0x1]
        %v262 = vld [vmem:[%s249 + $0x2] sm:$0x1]
        %v263 = vld [vmem:[%s249 + $0x3] sm:$0x1]
        %v264 = vld [vmem:[%s256] sm:$0xff]
        %v265 = vld [vmem:[%s256 + $0x8] sm:$0x7]
        %v266 = vld [vmem:[%s256 + $0x10] sm:$0xff]
        %v267 = vld [vmem:[%s256 + $0x18] sm:$0x7]
        %v268 = vld [vmem:[%s256 + $0x20] sm:$0xff]
        %v269 = vld [vmem:[%s256 + $0x28] sm:$0x7]
        %v270 = vld [vmem:[%s256 + $0x30] sm:$0xff]
        %v271 = vld [vmem:[%s256 + $0x38] sm:$0x7]
        %v272 = vld [vmem:[%s1] sm:$0xf]
        %v273 = vld [vmem:[%s2] sm:$0xf]
        %274 = vst [vmem:[%s238] sm:$0x1] %v260
        %275 = vst [vmem:[%s238 + $0x10] sm:$0x1] %v261
        %276 = vst [vmem:[%s238 + $0x20] sm:$0x1] %v262
        %277 = vst [vmem:[%s238 + $0x30] sm:$0x1] %v263
        %278 = vst [vmem:[%s238 + $0x1] sm:$0xf] %v272
        %279 = vst [vmem:[%s238 + $0x11] sm:$0xf] %v272
        %280 = vst [vmem:[%s238 + $0x21] sm:$0xf] %v272
        %281 = vst [vmem:[%s238 + $0x31] sm:$0xf] %v272
        %282 = vst [vmem:[%s238 + $0x5] sm:$0xff] %v264
        %283 = vst [vmem:[%s238 + $0xd] sm:$0x7] %v265
        %284 = vst [vmem:[%s238 + $0x15] sm:$0xff] %v266
        %285 = vst [vmem:[%s238 + $0x1d] sm:$0x7] %v267
        %286 = vst [vmem:[%s238 + $0x25] sm:$0xff] %v268
        %287 = vst [vmem:[%s238 + $0x2d] sm:$0x7] %v269
        %288 = vst [vmem:[%s238 + $0x35] sm:$0xff] %v270
        %289 = vst [vmem:[%s238 + $0x3d] sm:$0x7] %v271
        %290 = vst [vmem:[%s245] sm:$0x1] %v260
        %291 = vst [vmem:[%s245 + $0x10] sm:$0x1] %v261
        %292 = vst [vmem:[%s245 + $0x20] sm:$0x1] %v262
        %293 = vst [vmem:[%s245 + $0x30] sm:$0x1] %v263
        %294 = vst [vmem:[%s245 + $0x1] sm:$0xf] %v273
        %295 = vst [vmem:[%s245 + $0x11] sm:$0xf] %v273
        %296 = vst [vmem:[%s245 + $0x21] sm:$0xf] %v273
        %297 = vst [vmem:[%s245 + $0x31] sm:$0xf] %v273
        %298 = vst [vmem:[%s245 + $0x5] sm:$0xff] %v264
        %299 = vst [vmem:[%s245 + $0xd] sm:$0x7] %v265
        %300 = vst [vmem:[%s245 + $0x15] sm:$0xff] %v266
        %301 = vst [vmem:[%s245 + $0x1d] sm:$0x7] %v267
        %302 = vst [vmem:[%s245 + $0x25] sm:$0xff] %v268
        %303 = vst [vmem:[%s245 + $0x2d] sm:$0x7] %v269
        %304 = vst [vmem:[%s245 + $0x35] sm:$0xff] %v270
        %305 = vst [vmem:[%s245 + $0x3d] sm:$0x7] %v271
        %s306 = sand.u32 %s125, 1
        %s307 = scalar_lea.sflag [#allocation3], %s306
        %s308 = sand.u32 %s125, 1
        %s309 = smul.addr %s308, 64
        %s310 = scalar_lea.vmem [#allocation2], %s309
        %s311 = sand.u32 %s151, 1
        %s312 = scalar_lea.sflag [#allocation5], %s311
        %s313 = sand.u32 %s151, 1
        %s314 = smul.addr %s313, 64
        %s315 = scalar_lea.vmem [#allocation4], %s314
        // Predicated region
        $region37: #{tpu_custom_call.1} parent=35 // pred_check
          %p316 = pneg %p135
        $region38: #{tpu_custom_call.1} parent=35 // pred_check_branch
          %318 = sbr.rel (%p316) target = $region40
        $region39: #{tpu_custom_call.1} parent=35 // pred_region
          %s319 = smul.u32 4, %s23
          %s321 = ssub.s32 1024, 1024
          %322 = vsyncadd %s307, %s321
          %s323 = smul.addr %s319, 2
          %s324 = smul.addr %s323, 128
          %s325 = scalar_lea.hbm %s4, %s324
          %s326 = sshll.u32 %s310, 4
          %s327 = int_to_ptr.vmem [resolvable:$true] %s326
          %332 = dma.vmem_to_hbm [thread:$0]  %s327, 1024, %s325, %s307, 128, 128, 8
        $region40: #{tpu_custom_call.1} parent=35 // pred_fallthru
          _
        // Predicated region
        $region41: #{tpu_custom_call.1} parent=35 // pred_check
          %p333 = pneg %p161
        $region42: #{tpu_custom_call.1} parent=35 // pred_check_branch
          %335 = sbr.rel (%p333) target = $region44
        $region43: #{tpu_custom_call.1} parent=35 // pred_region
          %s336 = smul.u32 4, %s23
          %s338 = ssub.s32 1024, 1024
          %339 = vsyncadd %s312, %s338
          %s340 = smul.addr %s336, 2
          %s341 = smul.addr %s340, 128
          %s342 = scalar_lea.hbm %s5, %s341
          %s343 = sshll.u32 %s315, 4
          %s344 = int_to_ptr.vmem [resolvable:$true] %s343
          %349 = dma.vmem_to_hbm [thread:$0]  %s344, 1024, %s342, %s312, 128, 128, 8
        $region44: #{tpu_custom_call.1} parent=35 // pred_fallthru
          _
      $region36: #{tpu_custom_call.1} parent=5 // pred_fallthru
        _
      %p350 = scmp.le.s32.totalorder 2, %s18
      // Predicated region
      $region45: #{tpu_custom_call.1} parent=5 // pred_check
        %p351 = pneg %p350
      $region46: #{tpu_custom_call.1} parent=5 // pred_check_branch
        %353 = sbr.rel (%p351) target = $region48
      $region47: #{tpu_custom_call.1} parent=5 // pred_region
        %s354 = ssub.s32 %s18, 2
        // Predicated region
        $region49: #{tpu_custom_call.1} parent=47 // pred_check
          %p355 = pneg %p141
        $region50: #{tpu_custom_call.1} parent=47 // pred_check_branch
          %357 = sbr.rel (%p355) target = $region52
        $region51: #{tpu_custom_call.1} parent=47 // pred_region
          %s358 = sand.u32 %s126, 1
          %s359 = scalar_lea.sflag [#allocation3], %s358
          %s360 = sand.u32 %s126, 1
          %s361 = smul.addr %s360, 64
          %s362 = scalar_lea.vmem [#allocation2], %s361
          %363 = dma.done %s359, 1024
        $region52: #{tpu_custom_call.1} parent=47 // pred_fallthru
          _
        // Predicated region
        $region53: #{tpu_custom_call.1} parent=47 // pred_check
          %p364 = pneg %p167
        $region54: #{tpu_custom_call.1} parent=47 // pred_check_branch
          %366 = sbr.rel (%p364) target = $region56
        $region55: #{tpu_custom_call.1} parent=47 // pred_region
          %s367 = sand.u32 %s152, 1
          %s368 = scalar_lea.sflag [#allocation5], %s367
          %s369 = sand.u32 %s152, 1
          %s370 = smul.addr %s369, 64
          %s371 = scalar_lea.vmem [#allocation4], %s370
          %372 = dma.done %s368, 1024
        $region56: #{tpu_custom_call.1} parent=47 // pred_fallthru
          _
      $region48: #{tpu_custom_call.1} parent=5 // pred_fallthru
        _
    $region6: #{tpu_custom_call.1} parent=1 // loop_footer
      %s22 = sadd.s32 1, %s18
    $region7: #{tpu_custom_call.1} parent=1 // loop_footer_branch
      %17 = sbr.rel target = $region3
    $region8: #{tpu_custom_call.1} parent=1 // loop_exit
      _
    %373 = vsyncpa [#allocation3], 1
    %s374 = scalar_lea.sflag [#allocation3], 1
    %375 = vsyncpa %s374, 1
    %376 = vsyncpa [#allocation5], 1
    %s377 = scalar_lea.sflag [#allocation5], 1
    %378 = vsyncpa %s377, 1

</llo_original>
